<compile_context>
chip_gen: v7x
topology: tpu7x:2x2x1
jax: 0.10.0
libtpu: 0.0.40
codegen_flags: <defaults>
</compile_context>

<pallas_src>
import functools
import math

import jax
import jax.numpy as jnp
from jax.experimental import pallas as pl
from jax.experimental.pallas import tpu as pltpu

_SUBLANE = 8


def _round_up(x, m):
    return (x + m - 1) // m * m


def _cdiv(a, b):
    return (a + b - 1) // b


def _num_tensorcores():
    # v7x has 2 TensorCores per chip; v5e/v6e have 1 (there the "parallel"
    # semantics flag is effectively a no-op, so this only matters on v7x).
    try:
        kind = jax.devices()[0].device_kind.lower()
    except Exception:
        return 1
    return 2 if ("v7" in kind or "7x" in kind) else 1


def _vmem_cap_bytes():
    try:
        return int(pltpu.get_tpu_info().vmem_capacity_bytes)
    except Exception:
        return 64 * 1024 * 1024  # conservative (v7x-sized) if query unavailable


# ----------------------------- Pallas kernel --------------------------------
def actor_mlp_kernel(x_ref, w1_ref, b1_ref, w2_ref, b2_ref, w3_ref, b3_ref,
                     o_ref, *, activation):
    """Fused forward for one batch tile: relu(xW1+b1)->relu(.W2+b2)->act(.W3+b3)."""
    x = x_ref[...].astype(jnp.float32)          # state.float() happens on-chip

    h1 = jnp.dot(x, w1_ref[...].astype(jnp.float32),
                 preferred_element_type=jnp.float32)
    h1 = jnp.maximum(h1 + b1_ref[...].astype(jnp.float32), 0.0)   # F.relu

    h2 = jnp.dot(h1, w2_ref[...].astype(jnp.float32),
                 preferred_element_type=jnp.float32)
    h2 = jnp.maximum(h2 + b2_ref[...].astype(jnp.float32), 0.0)   # F.relu

    z = jnp.dot(h2, w3_ref[...].astype(jnp.float32),
                preferred_element_type=jnp.float32)
    z = z + b3_ref[...].astype(jnp.float32)
    if activation == "tanh":
        a = jnp.tanh(z)                          # EUP path, free vs. VALU
    elif activation == "sigmoid":
        a = jax.nn.sigmoid(z)
    elif activation == "linear":
        a = z
    else:
        raise ValueError(f"Activation {activation} not supported")

    o_ref[...] = a.astype(o_ref.dtype)


# ------------------------- pure-JAX small-batch path -------------------------
def _mlp_jnp(x, params, activation):
    w1, b1, w2, b2, w3, b3 = params
    h1 = jnp.maximum(x.astype(jnp.float32) @ w1 + b1, 0.0)
    h2 = jnp.maximum(h1 @ w2 + b2, 0.0)
    z = h2 @ w3 + b3
    if activation == "tanh":
        return jnp.tanh(z)
    if activation == "sigmoid":
        return jax.nn.sigmoid(z)
    if activation == "linear":
        return z
    raise ValueError(f"Activation {activation} not supported")


# ------------------------------- wrapper -------------------------------------
def actor_forward(state, params, *, agent_idx=-1, activation="tanh",
                  tb_max=8192, min_pallas_batch=2048, use_pallas=None):
    """Reproduces ActorNetwork.forward; the MLP hot path is one fused,
    batch-tiled pallas_call (or plain jnp below `min_pallas_batch` rows)."""
    if activation not in ("tanh", "sigmoid", "linear"):
        raise ValueError(f"Activation {activation} not supported")

    w1, b1, w2, b2, w3, b3 = params
    n_input = w1.shape[0]
    n_features = w1.shape[1]
    n_out = w3.shape[1]

    # --- glue: agent selection / squeeze (matches the PyTorch forward) ------
    if agent_idx != -1 and state.ndim == 3:
        state = state[:, agent_idx, :]
    if n_input != 1 and state.ndim >= 2 and state.shape[1] == 1:
        state = jnp.squeeze(state, axis=1)       # torch.squeeze(state, 1)

    # Collapse all leading dims into one batch (nn.Linear acts on last dim).
    if state.ndim == 1:
        lead = ()
        x = state[None, :]
    else:
        lead = state.shape[:-1]
        x = state.reshape((-1, state.shape[-1]))
    B = x.shape[0]

    # Small-batch fallback: below a few thousand rows, XLA fusion beats the
    # pad/launch overhead of a custom call.
    if use_pallas is None:
        use_pallas = B >= min_pallas_batch
    if not use_pallas:
        out = _mlp_jnp(x, params, activation)
        return out.reshape(*lead, n_out)

    # --- VMEM budget (accurate, with headroom for compiler scratch) ---------
    in_bytes = x.dtype.itemsize
    vmem_cap = int(_vmem_cap_bytes() * 0.75)     # ~48 MiB v7x, ~96 MiB v5e/v6e
    weight_bytes = 2 * sum(int(a.size) * a.dtype.itemsize
                           for a in (w1, b1, w2, b2, w3, b3))  # 2x pipeline bufs
    per_row = (2 * n_input * in_bytes            # double-buffered x tile
               + 2 * n_out * 4                   # double-buffered out tile (f32)
               + 2 * n_features * 4)             # f32 h1/h2, live simultaneously
    fixed = weight_bytes + (4 << 20)             # compiler-internal scratch slack
    tb_budget = max(_SUBLANE, (vmem_cap - fixed) // max(per_row, 1))
    tb_cap = max(_SUBLANE, min(tb_max, int(tb_budget)))

    # --- tile count: minimal row padding, even step count on v7x ------------
    num_cores = _num_tensorcores()
    nt = max(1, _cdiv(B, tb_cap))
    if num_cores > 1 and B >= num_cores * _SUBLANE:
        nt = _round_up(max(nt, num_cores), num_cores)
    tb = _round_up(_cdiv(B, nt), _SUBLANE)
    b_pad = tb * nt

    if b_pad != B:
        # Only the small ragged remainder (< 8*nt rows) is padded; padded rows
        # are computed but sliced off below.
        x = jnp.pad(x, ((0, b_pad - B), (0, 0)))

    vmem_need = int(tb * per_row + fixed)
    vmem_limit = int(min(vmem_cap, max(16 * 1024 * 1024, vmem_need)))

    kernel = functools.partial(actor_mlp_kernel, activation=activation)

    # Weights/biases: full-shape blocks with constant index_map -> DMA'd once,
    # VMEM-resident across all batch tiles.
    out = pl.pallas_call(
        kernel,
        out_shape=jax.ShapeDtypeStruct((b_pad, n_out), jnp.float32),
        grid=(nt,),
        in_specs=[
            pl.BlockSpec((tb, n_input), lambda i: (i, 0)),   # streamed x tiles
            pl.BlockSpec(w1.shape, lambda i: (0, 0)),
            pl.BlockSpec(b1.shape, lambda i: (0, 0)),
            pl.BlockSpec(w2.shape, lambda i: (0, 0)),
            pl.BlockSpec(b2.shape, lambda i: (0, 0)),
            pl.BlockSpec(w3.shape, lambda i: (0, 0)),
            pl.BlockSpec(b3.shape, lambda i: (0, 0)),
        ],
        out_specs=pl.BlockSpec((tb, n_out), lambda i: (i, 0)),
        compiler_params=pltpu.CompilerParams(
            dimension_semantics=("parallel",),   # batch axis across TCs on v7x
            vmem_limit_bytes=vmem_limit),
    )(x, w1, b1, w2, b2, w3, b3)

    out = out[:B]                                # drop row padding (if any)
    return out.reshape(*lead, n_out)


# --------------------------- deterministic init ------------------------------
def xavier_uniform(key, fan_in, fan_out, gain):
    """PyTorch nn.init.xavier_uniform_, returned transposed to [in, out]."""
    bound = gain * math.sqrt(6.0 / (fan_in + fan_out))
    w = jax.random.uniform(key, (fan_out, fan_in), jnp.float32, -bound, bound)
    return w.T


def linear_bias(key, fan_in, fan_out):
    """PyTorch nn.Linear default bias init: U(-1/sqrt(fan_in), 1/sqrt(fan_in))."""
    bound = 1.0 / math.sqrt(fan_in)
    return jax.random.uniform(key, (1, fan_out), jnp.float32, -bound, bound)


def make_actor_params(key, n_input, n_features, n_output, activation="tanh"):
    gains = {"relu": math.sqrt(2.0), "tanh": 5.0 / 3.0,
             "sigmoid": 1.0, "linear": 1.0}
    k = jax.random.split(key, 6)
    w1 = xavier_uniform(k[0], n_input, n_features, gains["relu"])
    b1 = linear_bias(k[1], n_input, n_features)
    w2 = xavier_uniform(k[2], n_features, n_features, gains["relu"])
    b2 = linear_bias(k[3], n_features, n_features)
    w3 = xavier_uniform(k[4], n_features, n_output, gains[activation])
    b3 = linear_bias(k[5], n_features, n_output)
    return (w1, b1, w2, b2, w3, b3)


# ---------------------------------- main -------------------------------------
if __name__ == "__main__":
    # ActorNetwork(input_shape=(n_input,), output_shape=(n_output,),
    #              n_features=32, activation='tanh')
    B, n_input, n_features, n_output = 8, 16, 32, 4

    key = jax.random.PRNGKey(0)
    k_params, k_state, k_big = jax.random.split(key, 3)

    params = make_actor_params(k_params, n_input, n_features, n_output,
                               activation="tanh")
    w1, b1, w2, b2, w3, b3 = params

    def reference(s):
        return jnp.tanh(
            jnp.maximum(jnp.maximum(s @ w1 + b1, 0.0) @ w2 + b2, 0.0) @ w3 + b3)

    # --- small batch, Pallas path forced so the kernel is exercised ---------
    state = jax.random.normal(k_state, (B, n_input), jnp.float32)
    out = actor_forward(state, params, activation="tanh", use_pallas=True)
    out = jax.block_until_ready(out)
    ref = reference(state)
    assert out.shape == (B, n_output)
    assert jnp.allclose(out, ref, atol=1e-5, rtol=1e-5)

    # --- squeeze glue path: (B, 1, n_input) must match the 2-D path ---------
    out3 = actor_forward(state[:, None, :], params, activation="tanh",
                         use_pallas=True)
    out3 = jax.block_until_ready(out3)
    assert out3.shape == (B, n_output)
    assert jnp.allclose(out3, ref, atol=1e-5, rtol=1e-5)

    # --- multi-tile grid with ragged batch (exercises the pipelined path) ---
    Bm = 300
    state_m = jax.random.normal(k_big, (Bm, n_input), jnp.float32)
    out_m = actor_forward(state_m, params, activation="tanh",
                          use_pallas=True, tb_max=64)
    out_m = jax.block_until_ready(out_m)
    assert out_m.shape == (Bm, n_output)
    assert jnp.allclose(out_m, reference(state_m), atol=1e-5, rtol=1e-5)

    # --- auto small-batch fallback (plain jnp) must agree too ---------------
    out_fb = jax.block_until_ready(actor_forward(state, params,
                                                 activation="tanh"))
    assert jnp.allclose(out_fb, ref, atol=1e-5, rtol=1e-5)

    print("KERNEL_OK")
</pallas_src>

<mosaic_0001>
module attributes {stable_mosaic.version = 11 : i64} {
  func.func @actor_mlp_kernel(%arg0: i32, %arg1: memref<8x16xf32, #tpu.memory_space<vmem>>, %arg2: memref<16x32xf32, #tpu.memory_space<vmem>>, %arg3: memref<1x32xf32, #tpu.memory_space<vmem>>, %arg4: memref<32x32xf32, #tpu.memory_space<vmem>>, %arg5: memref<1x32xf32, #tpu.memory_space<vmem>>, %arg6: memref<32x4xf32, #tpu.memory_space<vmem>>, %arg7: memref<1x4xf32, #tpu.memory_space<vmem>>, %arg8: memref<8x4xf32, #tpu.memory_space<vmem>>) attributes {dimension_semantics = [#tpu.dimension_semantics<parallel>], iteration_bounds = array<i64: 1>, scalar_prefetch = 0 : i64, scratch_operands = 0 : i64, tpu.core_type = #tpu.core_type<tc>, window_params = [{transform_indices = @transform_0, window_bounds = array<i64: 8, 16>}, {pipeline_mode = #tpu.pipeline_mode<synchronous>, transform_indices = @transform_1, window_bounds = array<i64: 16, 32>}, {pipeline_mode = #tpu.pipeline_mode<synchronous>, transform_indices = @transform_2, window_bounds = array<i64: 1, 32>}, {pipeline_mode = #tpu.pipeline_mode<synchronous>, transform_indices = @transform_3, window_bounds = array<i64: 32, 32>}, {pipeline_mode = #tpu.pipeline_mode<synchronous>, transform_indices = @transform_4, window_bounds = array<i64: 1, 32>}, {pipeline_mode = #tpu.pipeline_mode<synchronous>, transform_indices = @transform_5, window_bounds = array<i64: 32, 4>}, {pipeline_mode = #tpu.pipeline_mode<synchronous>, transform_indices = @transform_6, window_bounds = array<i64: 1, 4>}, {transform_indices = @transform_7, window_bounds = array<i64: 8, 4>}]} {
    %c0 = arith.constant 0 : index
    %c0_0 = arith.constant 0 : index
    %0 = vector.load %arg1[%c0, %c0_0] : memref<8x16xf32, #tpu.memory_space<vmem>>, vector<8x16xf32>
    %c0_1 = arith.constant 0 : index
    %c0_2 = arith.constant 0 : index
    %1 = vector.load %arg2[%c0_1, %c0_2] : memref<16x32xf32, #tpu.memory_space<vmem>>, vector<16x32xf32>
    %cst = arith.constant dense<0.000000e+00> : vector<8x32xf32>
    %2 = tpu.matmul %0, %1, %cst {dimension_numbers = #tpu.dot_dimension_numbers<[1], [0], [0], [1], [0, 0, 1, 1], [], []>} : vector<8x16xf32>, vector<16x32xf32>, vector<8x32xf32> -> vector<8x32xf32>
    %c0_3 = arith.constant 0 : index
    %c0_4 = arith.constant 0 : index
    %3 = vector.load %arg3[%c0_3, %c0_4] : memref<1x32xf32, #tpu.memory_space<vmem>>, vector<1x32xf32>
    %4 = vector.broadcast %3 : vector<1x32xf32> to vector<8x32xf32>
    %5 = arith.addf %2, %4 : vector<8x32xf32>
    %cst_5 = arith.constant 0.000000e+00 : f32
    %6 = vector.broadcast %cst_5 : f32 to vector<8x32xf32>
    %7 = arith.maximumf %5, %6 : vector<8x32xf32>
    %c0_6 = arith.constant 0 : index
    %c0_7 = arith.constant 0 : index
    %8 = vector.load %arg4[%c0_6, %c0_7] : memref<32x32xf32, #tpu.memory_space<vmem>>, vector<32x32xf32>
    %cst_8 = arith.constant dense<0.000000e+00> : vector<8x32xf32>
    %9 = tpu.matmul %7, %8, %cst_8 {dimension_numbers = #tpu.dot_dimension_numbers<[1], [0], [0], [1], [0, 0, 1, 1], [], []>} : vector<8x32xf32>, vector<32x32xf32>, vector<8x32xf32> -> vector<8x32xf32>
    %c0_9 = arith.constant 0 : index
    %c0_10 = arith.constant 0 : index
    %10 = vector.load %arg5[%c0_9, %c0_10] : memref<1x32xf32, #tpu.memory_space<vmem>>, vector<1x32xf32>
    %11 = vector.broadcast %10 : vector<1x32xf32> to vector<8x32xf32>
    %12 = arith.addf %9, %11 : vector<8x32xf32>
    %cst_11 = arith.constant 0.000000e+00 : f32
    %13 = vector.broadcast %cst_11 : f32 to vector<8x32xf32>
    %14 = arith.maximumf %12, %13 : vector<8x32xf32>
    %c0_12 = arith.constant 0 : index
    %c0_13 = arith.constant 0 : index
    %15 = vector.load %arg6[%c0_12, %c0_13] : memref<32x4xf32, #tpu.memory_space<vmem>>, vector<32x4xf32>
    %cst_14 = arith.constant dense<0.000000e+00> : vector<8x4xf32>
    %16 = tpu.matmul %14, %15, %cst_14 {dimension_numbers = #tpu.dot_dimension_numbers<[1], [0], [0], [1], [0, 0, 1, 1], [], []>} : vector<8x32xf32>, vector<32x4xf32>, vector<8x4xf32> -> vector<8x4xf32>
    %c0_15 = arith.constant 0 : index
    %c0_16 = arith.constant 0 : index
    %17 = vector.load %arg7[%c0_15, %c0_16] : memref<1x4xf32, #tpu.memory_space<vmem>>, vector<1x4xf32>
    %18 = vector.broadcast %17 : vector<1x4xf32> to vector<8x4xf32>
    %19 = arith.addf %16, %18 : vector<8x4xf32>
    %20 = math.tanh %19 : vector<8x4xf32>
    %c0_17 = arith.constant 0 : index
    %c0_18 = arith.constant 0 : index
    %21 = vector.load %arg8[%c0_17, %c0_18] : memref<8x4xf32, #tpu.memory_space<vmem>>, vector<8x4xf32>
    tpu.vector_store %arg8[%c0_17, %c0_18], %20 {strides = array<i32>} : memref<8x4xf32, #tpu.memory_space<vmem>>, vector<8x4xf32>,
    return
  }
  func.func @transform_0(%arg0: i32) -> (i32, i32) {
    %c0_i32 = arith.constant 0 : i32
    %c0_i32_0 = arith.constant 0 : i32
    return %arg0, %c0_i32 : i32, i32
  }
  func.func @transform_1(%arg0: i32) -> (i32, i32) {
    %c0_i32 = arith.constant 0 : i32
    %c0_i32_0 = arith.constant 0 : i32
    %c0_i32_1 = arith.constant 0 : i32
    return %c0_i32, %c0_i32_0 : i32, i32
  }
  func.func @transform_2(%arg0: i32) -> (i32, i32) {
    %c0_i32 = arith.constant 0 : i32
    %c0_i32_0 = arith.constant 0 : i32
    %c0_i32_1 = arith.constant 0 : i32
    return %c0_i32, %c0_i32_0 : i32, i32
  }
  func.func @transform_3(%arg0: i32) -> (i32, i32) {
    %c0_i32 = arith.constant 0 : i32
    %c0_i32_0 = arith.constant 0 : i32
    %c0_i32_1 = arith.constant 0 : i32
    return %c0_i32, %c0_i32_0 : i32, i32
  }
  func.func @transform_4(%arg0: i32) -> (i32, i32) {
    %c0_i32 = arith.constant 0 : i32
    %c0_i32_0 = arith.constant 0 : i32
    %c0_i32_1 = arith.constant 0 : i32
    return %c0_i32, %c0_i32_0 : i32, i32
  }
  func.func @transform_5(%arg0: i32) -> (i32, i32) {
    %c0_i32 = arith.constant 0 : i32
    %c0_i32_0 = arith.constant 0 : i32
    %c0_i32_1 = arith.constant 0 : i32
    return %c0_i32, %c0_i32_0 : i32, i32
  }
  func.func @transform_6(%arg0: i32) -> (i32, i32) {
    %c0_i32 = arith.constant 0 : i32
    %c0_i32_0 = arith.constant 0 : i32
    %c0_i32_1 = arith.constant 0 : i32
    return %c0_i32, %c0_i32_0 : i32, i32
  }
  func.func @transform_7(%arg0: i32) -> (i32, i32) {
    %c0_i32 = arith.constant 0 : i32
    %c0_i32_0 = arith.constant 0 : i32
    return %arg0, %c0_i32 : i32, i32
  }
}

</mosaic_0001>

<llo_original>
// kernel: tpu_custom_call.1
$region0: #{tpu_custom_call.1}
  #allocation0 [shape = 'u32[]', space=smem, size = 0x4, offset = 0x4, fixed_abs, tag = 'smem constant byte address 0x4 - core index']
  #allocation1 [shape = 'u32[144,128]{1,0:T(1,128)}', space=vmem, size = 0x12000, scoped, tag = 'internal scratch']
  %s0 = inlined_call_operand.vmem [shape: f32[8,16], index: 0, kind: input, shape index: {}]
  %s1 = inlined_call_operand.hbm [shape: f32[16,32], index: 1, kind: input, shape index: {}]
  %s2 = inlined_call_operand.vmem [shape: f32[1,32], index: 2, kind: input, shape index: {}]
  %s3 = inlined_call_operand.vmem [shape: f32[32,32], index: 3, kind: input, shape index: {}]
  %s4 = inlined_call_operand.vmem [shape: f32[1,32], index: 4, kind: input, shape index: {}]
  %s5 = inlined_call_operand.vmem [shape: f32[32,4], index: 5, kind: input, shape index: {}]
  %s6 = inlined_call_operand.vmem [shape: f32[1,4], index: 6, kind: input, shape index: {}]
  %s7 = inlined_call_operand.vmem [shape: f32[8,4], index: 7, kind: output, shape index: {}]
  %s8 = sld [smem:[#allocation0]]
  $region42: #{tpu_custom_call.1} parent=0
    _
  %s10 = ssub.s32 1, %s8
  %s11 = scalar_select 0, %s10, %s8
  $region1: #{tpu_custom_call.1} parent=0
    #allocation2 [shape = 'u8[8192]{0}', space=vmem, size = 0x2000, scoped, tag = 'input window, operand 1, single buffered']
    #allocation3 [shape = 's32[1]{0}', space=sflag, size = 0x4, scoped, tag = 'scoped memory for tpu_custom_call.1']
    %12 = vsyncpa [#allocation3], 0
    // Predicated region
    $region2: #{tpu_custom_call.1} parent=1 // pred_check
      _
    $region3: #{tpu_custom_call.1} parent=1 // pred_check_branch
      %14 = sbr.rel (0) target = $region5
    $region4: #{tpu_custom_call.1} parent=1 // pred_region
      _
    $region5: #{tpu_custom_call.1} parent=1 // pred_fallthru
      _
    // Predicated region
    $region6: #{tpu_custom_call.1} parent=1 // pred_check
      _
    $region7: #{tpu_custom_call.1} parent=1 // pred_check_branch
      %16 = sbr.rel (0) target = $region9
    $region8: #{tpu_custom_call.1} parent=1 // pred_region
      %s18 = ssub.s32 256, 256
      %19 = vsyncadd [#allocation3], %s18
      %s20 = sshll.u32 [#allocation2], 4
      %s21 = int_to_ptr.vmem [resolvable:$true] %s20
      %26 = dma.hbm_to_vmem [thread:$0]  %s1, 256, %s21, [#allocation3], 128, 128, 8
    $region9: #{tpu_custom_call.1} parent=1 // pred_fallthru
      _
    // Predicated region
    $region10: #{tpu_custom_call.1} parent=1 // pred_check
      _
    $region11: #{tpu_custom_call.1} parent=1 // pred_check_branch
      %28 = sbr.rel (0) target = $region13
    $region12: #{tpu_custom_call.1} parent=1 // pred_region
      _
    $region13: #{tpu_custom_call.1} parent=1 // pred_fallthru
      _
    // Predicated region
    $region14: #{tpu_custom_call.1} parent=1 // pred_check
      _
    $region15: #{tpu_custom_call.1} parent=1 // pred_check_branch
      %30 = sbr.rel (0) target = $region17
    $region16: #{tpu_custom_call.1} parent=1 // pred_region
      _
    $region17: #{tpu_custom_call.1} parent=1 // pred_fallthru
      _
    // Predicated region
    $region18: #{tpu_custom_call.1} parent=1 // pred_check
      _
    $region19: #{tpu_custom_call.1} parent=1 // pred_check_branch
      %32 = sbr.rel (0) target = $region21
    $region20: #{tpu_custom_call.1} parent=1 // pred_region
      _
    $region21: #{tpu_custom_call.1} parent=1 // pred_fallthru
      _
    // Predicated region
    $region22: #{tpu_custom_call.1} parent=1 // pred_check
      _
    $region23: #{tpu_custom_call.1} parent=1 // pred_check_branch
      %34 = sbr.rel (0) target = $region25
    $region24: #{tpu_custom_call.1} parent=1 // pred_region
      _
    $region25: #{tpu_custom_call.1} parent=1 // pred_fallthru
      _
    // Predicated region
    $region26: #{tpu_custom_call.1} parent=1 // pred_check
      _
    $region27: #{tpu_custom_call.1} parent=1 // pred_check_branch
      %36 = sbr.rel (0) target = $region29
    $region28: #{tpu_custom_call.1} parent=1 // pred_region
      _
    $region29: #{tpu_custom_call.1} parent=1 // pred_fallthru
      _
    // Predicated region
    $region30: #{tpu_custom_call.1} parent=1 // pred_check
      _
    $region31: #{tpu_custom_call.1} parent=1 // pred_check_branch
      %38 = sbr.rel (0) target = $region33
    $region32: #{tpu_custom_call.1} parent=1 // pred_region
      %39 = dma.done [#allocation3], 256
    $region33: #{tpu_custom_call.1} parent=1 // pred_fallthru
      _
    %v40 = vld [vmem:[%s0] sm:$0xff]
    %v41 = vld [vmem:[#allocation2] sm:$0xff]
    %v42 = vld [vmem:[#allocation2 + $0x8] sm:$0xff]
    %v43 = vld [vmem:[%s2] sm:$0x1]
    %v45 = vlaneseq
    %v46 = vshrl.u32 %v45, 7
    %v47 = vsub.s32 0, %v46
    %v48 = vrot.slane %v43, %v47
    %vm50 = vcmask 130048
    %v52 = vsel %vm50, %v40, 0
    %54 = vmatprep.subr.mxu0 0.0
    %55 = vmatpush1.msra.mxu0 %v41
    %56 = vmatprep.subr.mxu0 0.0
    %57 = vmatpush1.msra.mxu0 %v42
    %58 = vmatprep.subr.mxu0 0.0
    %59 = vmatpush1.msra.mxu0 0.0
    %60 = vmatprep.subr.mxu0 0.0
    %61 = vmatpush1.msra.mxu0 0.0
    %62 = vmatprep.subr.mxu0 0.0
    %63 = vmatpush1.msra.mxu0 0.0
    %64 = vmatprep.subr.mxu0 0.0
    %65 = vmatpush1.msra.mxu0 0.0
    %66 = vmatprep.subr.mxu0 0.0
    %67 = vmatpush1.msra.mxu0 0.0
    %68 = vmatprep.subr.mxu0 0.0
    %69 = vmatpush1.msra.mxu0 0.0
    %70 = vmatprep.subr.mxu0 0.0
    %71 = vmatpush1.msra.mxu0 0.0
    %72 = vmatprep.subr.mxu0 0.0
    %73 = vmatpush1.msra.mxu0 0.0
    %74 = vmatprep.subr.mxu0 0.0
    %75 = vmatpush1.msra.mxu0 0.0
    %76 = vmatprep.subr.mxu0 0.0
    %77 = vmatpush1.msra.mxu0 0.0
    %78 = vmatprep.subr.mxu0 0.0
    %79 = vmatpush1.msra.mxu0 0.0
    %80 = vmatprep.subr.mxu0 0.0
    %81 = vmatpush1.msra.mxu0 0.0
    %82 = vmatprep.subr.mxu0 0.0
    %83 = vmatpush1.msra.mxu0 0.0
    %84 = vmatprep.subr.mxu0 0.0
    %85 = vmatpush1.msra.mxu0 0.0
    %86 = vmatprep.subr.mxu0 0.0
    %87 = vmatpush1.msra.mxu0 0.0
    %88 = vmatprep.subr.mxu0 0.0
    %89 = vmatpush1.msra.mxu0 0.0
    %90 = vmatprep.subr.mxu0 0.0
    %91 = vmatpush1.msra.mxu0 0.0
    %92 = vmatprep.subr.mxu0 0.0
    %93 = vmatpush1.msra.mxu0 0.0
    %94 = vmatprep.subr.mxu0 0.0
    %95 = vmatpush1.msra.mxu0 0.0
    %96 = vmatprep.subr.mxu0 0.0
    %97 = vmatpush1.msra.mxu0 0.0
    %98 = vmatprep.subr.mxu0 0.0
    %99 = vmatpush1.msra.mxu0 0.0
    %100 = vmatprep.subr.mxu0 0.0
    %101 = vmatpush1.msra.mxu0 0.0
    %102 = vmatprep.subr.mxu0 0.0
    %103 = vmatpush1.msra.mxu0 0.0
    %104 = vmatprep.subr.mxu0 0.0
    %105 = vmatpush1.msra.mxu0 0.0
    %106 = vmatprep.subr.mxu0 0.0
    %107 = vmatpush1.msra.mxu0 0.0
    %108 = vmatprep.subr.mxu0 0.0
    %109 = vmatpush1.msra.mxu0 0.0
    %110 = vmatprep.subr.mxu0 0.0
    %111 = vmatpush1.msra.mxu0 0.0
    %112 = vmatprep.subr.mxu0 0.0
    %113 = vmatpush1.msra.mxu0 0.0
    %114 = vmatprep.subr.mxu0 0.0
    %115 = vmatpush1.msra.mxu0 0.0
    %116 = vmatprep.subr.mxu0 0.0
    %117 = vmatpush1.msra.mxu0 0.0
    %118 = vmatprep.mubr.f32.mxu0 0.0
    %119 = vmatmul.mubr.f32.gmra.mrb[0].mxu0 %v52
    %v120 = vpop.f32.mrb[0].mxu0
    %v121 = vadd.f32 %v48, %v120
    %v122 = vpop.f32.mrb[0].mxu0
    %123 = vdwg.mxu0
    %v124 = vmax.f32 %v121, 0.0
    %v125 = vld [vmem:[%s3] sm:$0xff]
    %v126 = vld [vmem:[%s3 + $0x8] sm:$0xff]
    %v127 = vld [vmem:[%s3 + $0x10] sm:$0xff]
    %v128 = vld [vmem:[%s3 + $0x18] sm:$0xff]
    %v129 = vld [vmem:[%s4] sm:$0x1]
    %v131 = vlaneseq
    %v132 = vshrl.u32 %v131, 7
    %v133 = vsub.s32 0, %v132
    %v134 = vrot.slane %v129, %v133
    %vm136 = vcmask 261120
    %v138 = vsel %vm136, %v124, 0
    %140 = vmatprep.subr.mxu0 0.0
    %141 = vmatpush1.msra.mxu0 %v125
    %142 = vmatprep.subr.mxu0 0.0
    %143 = vmatpush1.msra.mxu0 %v126
    %144 = vmatprep.subr.mxu0 0.0
    %145 = vmatpush1.msra.mxu0 %v127
    %146 = vmatprep.subr.mxu0 0.0
    %147 = vmatpush1.msra.mxu0 %v128
    %148 = vmatprep.subr.mxu0 0.0
    %149 = vmatpush1.msra.mxu0 0.0
    %150 = vmatprep.subr.mxu0 0.0
    %151 = vmatpush1.msra.mxu0 0.0
    %152 = vmatprep.subr.mxu0 0.0
    %153 = vmatpush1.msra.mxu0 0.0
    %154 = vmatprep.subr.mxu0 0.0
    %155 = vmatpush1.msra.mxu0 0.0
    %156 = vmatprep.subr.mxu0 0.0
    %157 = vmatpush1.msra.mxu0 0.0
    %158 = vmatprep.subr.mxu0 0.0
    %159 = vmatpush1.msra.mxu0 0.0
    %160 = vmatprep.subr.mxu0 0.0
    %161 = vmatpush1.msra.mxu0 0.0
    %162 = vmatprep.subr.mxu0 0.0
    %163 = vmatpush1.msra.mxu0 0.0
    %164 = vmatprep.subr.mxu0 0.0
    %165 = vmatpush1.msra.mxu0 0.0
    %166 = vmatprep.subr.mxu0 0.0
    %167 = vmatpush1.msra.mxu0 0.0
    %168 = vmatprep.subr.mxu0 0.0
    %169 = vmatpush1.msra.mxu0 0.0
    %170 = vmatprep.subr.mxu0 0.0
    %171 = vmatpush1.msra.mxu0 0.0
    %172 = vmatprep.subr.mxu0 0.0
    %173 = vmatpush1.msra.mxu0 0.0
    %174 = vmatprep.subr.mxu0 0.0
    %175 = vmatpush1.msra.mxu0 0.0
    %176 = vmatprep.subr.mxu0 0.0
    %177 = vmatpush1.msra.mxu0 0.0
    %178 = vmatprep.subr.mxu0 0.0
    %179 = vmatpush1.msra.mxu0 0.0
    %180 = vmatprep.subr.mxu0 0.0
    %181 = vmatpush1.msra.mxu0 0.0
    %182 = vmatprep.subr.mxu0 0.0
    %183 = vmatpush1.msra.mxu0 0.0
    %184 = vmatprep.subr.mxu0 0.0
    %185 = vmatpush1.msra.mxu0 0.0
    %186 = vmatprep.subr.mxu0 0.0
    %187 = vmatpush1.msra.mxu0 0.0
    %188 = vmatprep.subr.mxu0 0.0
    %189 = vmatpush1.msra.mxu0 0.0
    %190 = vmatprep.subr.mxu0 0.0
    %191 = vmatpush1.msra.mxu0 0.0
    %192 = vmatprep.subr.mxu0 0.0
    %193 = vmatpush1.msra.mxu0 0.0
    %194 = vmatprep.subr.mxu0 0.0
    %195 = vmatpush1.msra.mxu0 0.0
    %196 = vmatprep.subr.mxu0 0.0
    %197 = vmatpush1.msra.mxu0 0.0
    %198 = vmatprep.subr.mxu0 0.0
    %199 = vmatpush1.msra.mxu0 0.0
    %200 = vmatprep.subr.mxu0 0.0
    %201 = vmatpush1.msra.mxu0 0.0
    %202 = vmatprep.subr.mxu0 0.0
    %203 = vmatpush1.msra.mxu0 0.0
    %204 = vmatprep.mubr.f32.mxu0 0.0
    %205 = vmatmul.mubr.f32.gmra.mrb[0].mxu0 %v138
    %v206 = vpop.f32.mrb[0].mxu0
    %v207 = vadd.f32 %v134, %v206
    %v208 = vpop.f32.mrb[0].mxu0
    %209 = vdwg.mxu0
    %v210 = vmax.f32 %v207, 0.0
    %v211 = vld [vmem:[%s5] sm:$0xff]
    %v212 = vld [vmem:[%s5 + $0x8] sm:$0xff]
    %v213 = vld [vmem:[%s5 + $0x10] sm:$0xff]
    %v214 = vld [vmem:[%s5 + $0x18] sm:$0xff]
    %v215 = vld [vmem:[%s6] sm:$0x1]
    %v217 = vlaneseq
    %v218 = vshrl.u32 %v217, 7
    %v219 = vsub.s32 0, %v218
    %v220 = vrot.slane %v215, %v219
    %v223 = vsel %vm136, %v210, 0
    %225 = vmatprep.subr.mxu0 0.0
    %226 = vmatpush1.msra.mxu0 %v211
    %227 = vmatprep.subr.mxu0 0.0
    %228 = vmatpush1.msra.mxu0 %v212
    %229 = vmatprep.subr.mxu0 0.0
    %230 = vmatpush1.msra.mxu0 %v213
    %231 = vmatprep.subr.mxu0 0.0
    %232 = vmatpush1.msra.mxu0 %v214
    %233 = vmatprep.subr.mxu0 0.0
    %234 = vmatpush1.msra.mxu0 0.0
    %235 = vmatprep.subr.mxu0 0.0
    %236 = vmatpush1.msra.mxu0 0.0
    %237 = vmatprep.subr.mxu0 0.0
    %238 = vmatpush1.msra.mxu0 0.0
    %239 = vmatprep.subr.mxu0 0.0
    %240 = vmatpush1.msra.mxu0 0.0
    %241 = vmatprep.subr.mxu0 0.0
    %242 = vmatpush1.msra.mxu0 0.0
    %243 = vmatprep.subr.mxu0 0.0
    %244 = vmatpush1.msra.mxu0 0.0
    %245 = vmatprep.subr.mxu0 0.0
    %246 = vmatpush1.msra.mxu0 0.0
    %247 = vmatprep.subr.mxu0 0.0
    %248 = vmatpush1.msra.mxu0 0.0
    %249 = vmatprep.subr.mxu0 0.0
    %250 = vmatpush1.msra.mxu0 0.0
    %251 = vmatprep.subr.mxu0 0.0
    %252 = vmatpush1.msra.mxu0 0.0
    %253 = vmatprep.subr.mxu0 0.0
    %254 = vmatpush1.msra.mxu0 0.0
    %255 = vmatprep.subr.mxu0 0.0
    %256 = vmatpush1.msra.mxu0 0.0
    %257 = vmatprep.subr.mxu0 0.0
    %258 = vmatpush1.msra.mxu0 0.0
    %259 = vmatprep.subr.mxu0 0.0
    %260 = vmatpush1.msra.mxu0 0.0
    %261 = vmatprep.subr.mxu0 0.0
    %262 = vmatpush1.msra.mxu0 0.0
    %263 = vmatprep.subr.mxu0 0.0
    %264 = vmatpush1.msra.mxu0 0.0
    %265 = vmatprep.subr.mxu0 0.0
    %266 = vmatpush1.msra.mxu0 0.0
    %267 = vmatprep.subr.mxu0 0.0
    %268 = vmatpush1.msra.mxu0 0.0
    %269 = vmatprep.subr.mxu0 0.0
    %270 = vmatpush1.msra.mxu0 0.0
    %271 = vmatprep.subr.mxu0 0.0
    %272 = vmatpush1.msra.mxu0 0.0
    %273 = vmatprep.subr.mxu0 0.0
    %274 = vmatpush1.msra.mxu0 0.0
    %275 = vmatprep.subr.mxu0 0.0
    %276 = vmatpush1.msra.mxu0 0.0
    %277 = vmatprep.subr.mxu0 0.0
    %278 = vmatpush1.msra.mxu0 0.0
    %279 = vmatprep.subr.mxu0 0.0
    %280 = vmatpush1.msra.mxu0 0.0
    %281 = vmatprep.subr.mxu0 0.0
    %282 = vmatpush1.msra.mxu0 0.0
    %283 = vmatprep.subr.mxu0 0.0
    %284 = vmatpush1.msra.mxu0 0.0
    %285 = vmatprep.subr.mxu0 0.0
    %286 = vmatpush1.msra.mxu0 0.0
    %287 = vmatprep.subr.mxu0 0.0
    %288 = vmatpush1.msra.mxu0 0.0
    %289 = vmatprep.mubr.f32.mxu0 0.0
    %290 = vmatmul.mubr.f32.gmra.mrb[0].mxu0 %v223
    %v291 = vpop.f32.mrb[0].mxu0
    %v292 = vadd.f32 %v220, %v291
    %v293 = vpop.f32.mrb[0].mxu0
    %294 = vdwg.mxu0
    %v295 = vtanh.pop %v292
    %vm296 = vcmask 31744
    %297 = vst.msk [vmem:[%s7] sm:$0xff] %vm296, %v295
    // Predicated region
    $region34: #{tpu_custom_call.1} parent=1 // pred_check
      _
    $region35: #{tpu_custom_call.1} parent=1 // pred_check_branch
      %299 = sbr.rel (0) target = $region37
    $region36: #{tpu_custom_call.1} parent=1 // pred_region
      _
    $region37: #{tpu_custom_call.1} parent=1 // pred_fallthru
      _
    // Predicated region
    $region38: #{tpu_custom_call.1} parent=1 // pred_check
      _
    $region39: #{tpu_custom_call.1} parent=1 // pred_check_branch
      %301 = sbr.rel (0) target = $region41
    $region40: #{tpu_custom_call.1} parent=1 // pred_region
      _
    $region41: #{tpu_custom_call.1} parent=1 // pred_fallthru
      _
    %302 = vsyncpa [#allocation3], 1

</llo_original>
